<compile_context>
chip_gen: v6e
topology: v6e:2x2x1
jax: 0.10.0
libtpu: 0.0.40
codegen_flags: <defaults>
</compile_context>

<pallas_src>
import jax
import jax.numpy as jnp
from jax import lax
from jax.experimental import pallas as pl
from jax.experimental.pallas import tpu as pltpu

# --- small, module-consistent shapes -----------------------------------------
B = 2            # batch
S = 16           # sequence length
E = 32           # toy embedding dim (configs.embedding_size)
H = 32           # bert_output_dim
C = 6            # num_classes
C_PAD = 128      # lane-dense padding of the class axis (view-sliced at use)
VOCAB = 50       # toy vocab size
NTYPE = 2        # BERT segment ids are {0, 1}
K_OH = 64        # one-hot contraction depth: VOCAB + NTYPE padded to 64
                 #   (64 is a multiple of the bf16 sublane tile -> aligned slices)

# TODO(synk): BertModel.from_pretrained (pretrained Chinese-PERT weights /
# full transformer encoder) has no Pallas equivalent here; it is replaced by
# the deterministic toy encoder below.


def _vmem_specs(n):
    return [pl.BlockSpec(memory_space=pltpu.MemorySpace.VMEM) for _ in range(n)]


# ----------------------------- fused pert kernel ------------------------------
def pert_kernel(tok_ref, typ_ref, mask_ref, tab_ref, w_ref, b_ref, out_ref):
    f32 = jnp.float32
    bf16 = jnp.bfloat16

    # --- combined one-hot (token + segment) -----------------------------------
    # Column layout of the contraction axis:
    #   [0, VOCAB)           : token one-hot
    #   [VOCAB, VOCAB+NTYPE) : segment one-hot
    #   [VOCAB+NTYPE, K_OH)  : zero padding (never hit)
    tok = tok_ref[...]                                             # [B, S] i32
    typ = typ_ref[...]                                             # [B, S] i32
    iota_k = lax.broadcasted_iota(jnp.int32, (B, S, K_OH), 2)
    oh = jnp.logical_or(iota_k == tok[:, :, None],
                        iota_k == (typ[:, :, None] + VOCAB))
    oh2 = oh.astype(bf16).reshape(B * S, K_OH)                     # [B*S, K] bf16

    # --- folded (embedding + encoder) matmul ----------------------------------
    # tab rows 0..K_OH-1 hold (emb|type)-table @ w_enc, rows K_OH.. hold
    # pos_table @ w_enc + b_enc, so one 2-D MXU matmul produces h directly.
    h_pre = jnp.dot(oh2, tab_ref[0:K_OH, :],
                    preferred_element_type=f32)                    # [B*S, H] f32
    pos_bias = tab_ref[K_OH:K_OH + S, :].astype(f32)               # [S, H]
    h = jnp.tanh(h_pre.reshape(B, S, H) + pos_bias[None, :, :])    # [B, S, H]

    # --- toy pooling: CLS (pre-mask) + masked mean over the sequence ----------
    mask = mask_ref[...]                                           # [B, S] f32
    hm = jnp.where(mask[:, :, None] > 0.0, h, 0.0)
    denom = jnp.maximum(jnp.sum(mask, axis=1, keepdims=True), 1.0)
    ctx = jnp.sum(hm, axis=1) * pl.reciprocal(denom, approx=True)  # [B, H]
    cls = h[:, 0, :]                                               # [B, H]
    x = (cls + ctx).astype(bf16)                                   # [B, H] bf16

    biases = b_ref[...]                                            # [2, 128] f32

    # --- toy pooler: tanh(x @ w_pool), lane-dense 128-wide --------------------
    # w_ref rows 0..H-1 = w_pool zero-padded to 128 lanes; padded pooled lanes
    # are exactly tanh(0 + 0) = 0.
    pooled = jnp.tanh(jnp.dot(x, w_ref[0:H, :], preferred_element_type=f32)
                      + biases[0:1, :])                            # [B, 128] f32

    # --- head: relu(fc(pooled)), lane-dense [B, C_PAD] store ------------------
    # w_ref rows H..H+127 = fc_w zero-padded to [128, 128] (extra rows/cols 0).
    logits = jnp.dot(pooled.astype(bf16), w_ref[H:H + C_PAD, :],
                     preferred_element_type=f32) + biases[1:2, :]  # [B, 128]
    out_ref[...] = jnp.maximum(logits, 0.0)


@jax.jit
def pert_forward(params, bert_token, bert_mask, token_type):
    """Returns lane-dense [B, C_PAD] output; lanes C..C_PAD-1 are exact zeros.

    Slice [:, :C] at the point of use (fused into the consumer) instead of as a
    standalone glue op after the kernel.
    """
    return pl.pallas_call(
        pert_kernel,
        out_shape=jax.ShapeDtypeStruct((B, C_PAD), jnp.float32),
        in_specs=_vmem_specs(6),
        out_specs=pl.BlockSpec(memory_space=pltpu.MemorySpace.VMEM),
    )(bert_token, token_type, bert_mask.astype(jnp.float32),
      params["table"], params["wstack"], params["biases"])


# ------------------------------- params ---------------------------------------
def init_params(key):
    ks = jax.random.split(key, 9)
    s = 0.05
    n = lambda k, shp: s * jax.random.normal(k, shp, jnp.float32)

    # underlying toy-BERT weights
    emb_table  = n(ks[0], (VOCAB, E))
    type_table = n(ks[1], (NTYPE, E))
    pos_table  = n(ks[2], (S, E))
    w_enc      = n(ks[3], (E, H))
    b_enc      = n(ks[4], (1, H))
    w_pool     = n(ks[5], (H, H))
    b_pool     = n(ks[6], (1, H))
    fc_w       = n(ks[7], (H, C))
    fc_b       = n(ks[8], (1, C))

    # --- fold the encoder projection into the lookup tables (once, host-side) -
    tok_tab  = emb_table @ w_enc                   # [VOCAB, H]
    typ_tab  = type_table @ w_enc                  # [NTYPE, H]
    pos_bias = pos_table @ w_enc + b_enc           # [S, H]  (b_enc folded in)

    # packed table: rows [0,VOCAB)=tok, [VOCAB,VOCAB+NTYPE)=type, pad to K_OH,
    # rows [K_OH, K_OH+S) = positional bias.  bf16 MXU operand.
    table = jnp.zeros((K_OH + S, H), jnp.float32)
    table = table.at[:VOCAB].set(tok_tab)
    table = table.at[VOCAB:VOCAB + NTYPE].set(typ_tab)
    table = table.at[K_OH:].set(pos_bias)
    table = table.astype(jnp.bfloat16)

    # packed weight stack [H + C_PAD, C_PAD] (all lane-dense, bf16):
    #   rows [0, H)        : w_pool zero-padded to 128 lanes
    #   rows [H, H + 128)  : fc_w zero-padded to [128, 128]
    wstack = jnp.zeros((H + C_PAD, C_PAD), jnp.float32)
    wstack = wstack.at[:H, :H].set(w_pool)
    wstack = wstack.at[H:H + H, :C].set(fc_w)
    wstack = wstack.astype(jnp.bfloat16)

    # packed bias stack [2, 128] f32: row 0 = b_pool (padded), row 1 = fc_b.
    biases = jnp.zeros((2, C_PAD), jnp.float32)
    biases = biases.at[0, :H].set(b_pool[0])
    biases = biases.at[1, :C].set(fc_b[0])

    return {"table": table, "wstack": wstack, "biases": biases}


if __name__ == "__main__":
    key = jax.random.PRNGKey(0)
    kp, kd = jax.random.split(key)
    params = init_params(kp)

    kt = jax.random.split(kd, 3)
    bert_token = jax.random.randint(kt[0], (B, S), 0, VOCAB, jnp.int32)
    bert_mask = jnp.concatenate(
        [jnp.ones((B, S - 4), jnp.float32), jnp.zeros((B, 4), jnp.float32)],
        axis=1)
    # second half of the tokens is segment 1
    token_type = jnp.concatenate(
        [jnp.zeros((B, S // 2), jnp.int32), jnp.ones((B, S // 2), jnp.int32)],
        axis=1)

    out_pad = pert_forward(params, bert_token, bert_mask, token_type)
    jax.block_until_ready(out_pad)

    # slice to num_classes at the point of use (padded lanes are exact zeros)
    out = out_pad[:, :C]

    assert out_pad.shape == (B, C_PAD)
    assert out.shape == (B, C)
    assert bool(jnp.all(jnp.isfinite(out_pad)))
    assert bool(jnp.all(out_pad >= 0.0))          # ReLU output
    assert bool(jnp.all(out_pad[:, C:] == 0.0))   # padded lanes are zero
    print("KERNEL_OK")
</pallas_src>

<mosaic_0001>
module attributes {stable_mosaic.version = 11 : i64} {
  func.func @pert_kernel(%arg0: memref<2x16xi32, #tpu.memory_space<vmem>>, %arg1: memref<2x16xi32, #tpu.memory_space<vmem>>, %arg2: memref<2x16xf32, #tpu.memory_space<vmem>>, %arg3: memref<80x32xbf16, #tpu.memory_space<vmem>>, %arg4: memref<160x128xbf16, #tpu.memory_space<vmem>>, %arg5: memref<2x128xf32, #tpu.memory_space<vmem>>, %arg6: memref<2x128xf32, #tpu.memory_space<vmem>>) attributes {dimension_semantics = [], scalar_prefetch = 0 : i64, scratch_operands = 0 : i64, tpu.core_type = #tpu.core_type<tc>} {
    %c0 = arith.constant 0 : index
    %c0_0 = arith.constant 0 : index
    %0 = vector.load %arg0[%c0, %c0_0] : memref<2x16xi32, #tpu.memory_space<vmem>>, vector<2x16xi32>
    %c0_1 = arith.constant 0 : index
    %c0_2 = arith.constant 0 : index
    %1 = vector.load %arg1[%c0_1, %c0_2] : memref<2x16xi32, #tpu.memory_space<vmem>>, vector<2x16xi32>
    %2 = tpu.iota {dimensions = array<i32: 2>} : vector<2x16x64xi32>
    %3 = vector.shape_cast %0 : vector<2x16xi32> to vector<2x16x1xi32>
    %4 = vector.broadcast %3 : vector<2x16x1xi32> to vector<2x16x64xi32>
    %5 = arith.cmpi eq, %2, %4 : vector<2x16x64xi32>
    %6 = vector.shape_cast %1 : vector<2x16xi32> to vector<2x16x1xi32>
    %c50_i32 = arith.constant 50 : i32
    %7 = vector.broadcast %c50_i32 : i32 to vector<2x16x1xi32>
    %8 = arith.addi %6, %7 : vector<2x16x1xi32>
    %9 = vector.broadcast %8 : vector<2x16x1xi32> to vector<2x16x64xi32>
    %10 = arith.cmpi eq, %2, %9 : vector<2x16x64xi32>
    %11 = arith.ori %5, %10 : vector<2x16x64xi1>
    %12 = arith.extui %11 : vector<2x16x64xi1> to vector<2x16x64xi32>
    %13 = arith.sitofp %12 : vector<2x16x64xi32> to vector<2x16x64xf32>
    %14 = arith.truncf %13 : vector<2x16x64xf32> to vector<2x16x64xbf16>
    %15 = vector.shape_cast %14 : vector<2x16x64xbf16> to vector<32x64xbf16>
    %c0_3 = arith.constant 0 : index
    %c0_4 = arith.constant 0 : index
    %16 = vector.load %arg3[%c0_3, %c0_4] : memref<80x32xbf16, #tpu.memory_space<vmem>>, vector<64x32xbf16>
    %cst = arith.constant dense<0.000000e+00> : vector<32x32xf32>
    %17 = tpu.matmul %15, %16, %cst {dimension_numbers = #tpu.dot_dimension_numbers<[1], [0], [0], [1], [0, 0, 1, 1], [], []>} : vector<32x64xbf16>, vector<64x32xbf16>, vector<32x32xf32> -> vector<32x32xf32>
    %c64 = arith.constant 64 : index
    %c0_5 = arith.constant 0 : index
    %18 = vector.load %arg3[%c64, %c0_5] : memref<80x32xbf16, #tpu.memory_space<vmem>>, vector<16x32xbf16>
    %19 = arith.extf %18 : vector<16x32xbf16> to vector<16x32xf32>
    %20 = vector.shape_cast %17 : vector<32x32xf32> to vector<2x16x32xf32>
    %21 = vector.shape_cast %19 : vector<16x32xf32> to vector<1x16x32xf32>
    %22 = vector.broadcast %21 : vector<1x16x32xf32> to vector<2x16x32xf32>
    %23 = arith.addf %20, %22 : vector<2x16x32xf32>
    %24 = math.tanh %23 : vector<2x16x32xf32>
    %c0_6 = arith.constant 0 : index
    %c0_7 = arith.constant 0 : index
    %25 = vector.load %arg2[%c0_6, %c0_7] : memref<2x16xf32, #tpu.memory_space<vmem>>, vector<2x16xf32>
    %26 = vector.shape_cast %25 : vector<2x16xf32> to vector<2x16x1xf32>
    %cst_8 = arith.constant 0.000000e+00 : f32
    %27 = vector.broadcast %cst_8 : f32 to vector<2x16x1xf32>
    %28 = arith.cmpf ogt, %26, %27 : vector<2x16x1xf32>
    %cst_9 = arith.constant 0.000000e+00 : f32
    %29 = vector.shape_cast %28 : vector<2x16x1xi1> to vector<2x16x1xi1>
    %30 = vector.broadcast %29 : vector<2x16x1xi1> to vector<2x16x32xi1>
    %31 = vector.broadcast %cst_9 : f32 to vector<2x16x32xf32>
    %32 = arith.select %30, %24, %31 : vector<2x16x32xi1>, vector<2x16x32xf32>
    %cst_10 = arith.constant dense<0.000000e+00> : vector<2xf32>
    %33 = vector.multi_reduction <add>, %25, %cst_10 [1] : vector<2x16xf32> to vector<2xf32>
    %34 = vector.shape_cast %33 : vector<2xf32> to vector<2x1xf32>
    %cst_11 = arith.constant 1.000000e+00 : f32
    %35 = vector.broadcast %cst_11 : f32 to vector<2x1xf32>
    %36 = arith.maximumf %34, %35 : vector<2x1xf32>
    %cst_12 = arith.constant dense<0.000000e+00> : vector<2x32xf32>
    %37 = vector.multi_reduction <add>, %32, %cst_12 [1] : vector<2x16x32xf32> to vector<2x32xf32>
    %38 = tpu.reciprocal %36 {approx = true} : vector<2x1xf32> -> vector<2x1xf32>
    %39 = vector.broadcast %38 : vector<2x1xf32> to vector<2x32xf32>
    %40 = arith.mulf %37, %39 : vector<2x32xf32>
    %41 = vector.extract_strided_slice %24 {offsets = [0, 0, 0], sizes = [2, 1, 32], strides = [1, 1, 1]} : vector<2x16x32xf32> to vector<2x1x32xf32>
    %42 = vector.shape_cast %41 : vector<2x1x32xf32> to vector<2x32xf32>
    %43 = arith.addf %42, %40 : vector<2x32xf32>
    %44 = arith.truncf %43 : vector<2x32xf32> to vector<2x32xbf16>
    %c0_13 = arith.constant 0 : index
    %c0_14 = arith.constant 0 : index
    %45 = vector.load %arg5[%c0_13, %c0_14] : memref<2x128xf32, #tpu.memory_space<vmem>>, vector<2x128xf32>
    %c0_15 = arith.constant 0 : index
    %c0_16 = arith.constant 0 : index
    %46 = vector.load %arg4[%c0_15, %c0_16] : memref<160x128xbf16, #tpu.memory_space<vmem>>, vector<32x128xbf16>
    %cst_17 = arith.constant dense<0.000000e+00> : vector<2x128xf32>
    %47 = tpu.matmul %44, %46, %cst_17 {dimension_numbers = #tpu.dot_dimension_numbers<[1], [0], [0], [1], [0, 0, 1, 1], [], []>} : vector<2x32xbf16>, vector<32x128xbf16>, vector<2x128xf32> -> vector<2x128xf32>
    %48 = vector.extract_strided_slice %45 {offsets = [0, 0], sizes = [1, 128], strides = [1, 1]} : vector<2x128xf32> to vector<1x128xf32>
    %49 = vector.broadcast %48 : vector<1x128xf32> to vector<2x128xf32>
    %50 = arith.addf %47, %49 : vector<2x128xf32>
    %51 = math.tanh %50 : vector<2x128xf32>
    %52 = arith.truncf %51 : vector<2x128xf32> to vector<2x128xbf16>
    %c32 = arith.constant 32 : index
    %c0_18 = arith.constant 0 : index
    %53 = vector.load %arg4[%c32, %c0_18] : memref<160x128xbf16, #tpu.memory_space<vmem>>, vector<128x128xbf16>
    %cst_19 = arith.constant dense<0.000000e+00> : vector<2x128xf32>
    %54 = tpu.matmul %52, %53, %cst_19 {dimension_numbers = #tpu.dot_dimension_numbers<[1], [0], [0], [1], [0, 0, 1, 1], [], []>} : vector<2x128xbf16>, vector<128x128xbf16>, vector<2x128xf32> -> vector<2x128xf32>
    %55 = vector.extract_strided_slice %45 {offsets = [1, 0], sizes = [1, 128], strides = [1, 1]} : vector<2x128xf32> to vector<1x128xf32>
    %56 = vector.broadcast %55 : vector<1x128xf32> to vector<2x128xf32>
    %57 = arith.addf %54, %56 : vector<2x128xf32>
    %cst_20 = arith.constant 0.000000e+00 : f32
    %58 = vector.broadcast %cst_20 : f32 to vector<2x128xf32>
    %59 = arith.maximumf %57, %58 : vector<2x128xf32>
    %c0_21 = arith.constant 0 : index
    %c0_22 = arith.constant 0 : index
    %60 = vector.load %arg6[%c0_21, %c0_22] : memref<2x128xf32, #tpu.memory_space<vmem>>, vector<2x128xf32>
    tpu.vector_store %arg6[%c0_21, %c0_22], %59 {strides = array<i32>} : memref<2x128xf32, #tpu.memory_space<vmem>>, vector<2x128xf32>,
    return
  }
}

</mosaic_0001>

<llo_original>
// kernel: pert_forward.1
$region0: #{pert_forward.1}
  #allocation0 [shape = 'u32[]', space=smem, size = 0x4, offset = 0x4, fixed_abs, tag = 'smem constant byte address 0x4 - core index']
  #allocation1 [shape = 'u32[144,128]{1,0:T(1,128)}', space=vmem, size = 0x12000, scoped, tag = 'internal scratch']
  %s0 = inlined_call_operand.vmem [shape: s32[2,16], index: 0, kind: input, shape index: {}]
  %s1 = inlined_call_operand.vmem [shape: s32[2,16], index: 1, kind: input, shape index: {}]
  %s2 = inlined_call_operand.vmem [shape: f32[2,16], index: 2, kind: input, shape index: {}]
  %s3 = inlined_call_operand.vmem [shape: bf16[80,32], index: 3, kind: input, shape index: {}]
  %s4 = inlined_call_operand.hbm [shape: bf16[160,128], index: 4, kind: input, shape index: {}]
  %s5 = inlined_call_operand.vmem [shape: f32[2,128], index: 5, kind: input, shape index: {}]
  %s6 = inlined_call_operand.hbm [shape: f32[2,128], index: 6, kind: output, shape index: {}]
  %s7 = sld [smem:[#allocation0]]
  $region38: #{pert_forward.1} parent=0
    _
  %s9 = ssub.s32 1, %s7
  %s10 = scalar_select 0, %s9, %s7
  $region1: #{pert_forward.1} parent=0
    #allocation2 [shape = 'u8[40960]{0}', space=vmem, size = 0xa000, scoped, tag = 'input window, operand 4, single buffered']
    #allocation3 [shape = 's32[1]{0}', space=sflag, size = 0x4, scoped, tag = 'scoped memory for pert_forward.1']
    #allocation4 [shape = 's32[1]{0}', space=sflag, size = 0x4, scoped, tag = 'scoped memory for pert_forward.1']
    #allocation5 [shape = 'u8[1024]{0}', space=vmem, size = 0x400, scoped, tag = 'output window, operand 0, single buffered']
    %11 = vsyncpa [#allocation3], 0
    %12 = vsyncpa [#allocation4], 0
    // Predicated region
    $region2: #{pert_forward.1} parent=1 // pred_check
      _
    $region3: #{pert_forward.1} parent=1 // pred_check_branch
      %14 = sbr.rel (0) target = $region5
    $region4: #{pert_forward.1} parent=1 // pred_region
      _
    $region5: #{pert_forward.1} parent=1 // pred_fallthru
      _
    // Predicated region
    $region6: #{pert_forward.1} parent=1 // pred_check
      _
    $region7: #{pert_forward.1} parent=1 // pred_check_branch
      %16 = sbr.rel (0) target = $region9
    $region8: #{pert_forward.1} parent=1 // pred_region
      _
    $region9: #{pert_forward.1} parent=1 // pred_fallthru
      _
    // Predicated region
    $region10: #{pert_forward.1} parent=1 // pred_check
      _
    $region11: #{pert_forward.1} parent=1 // pred_check_branch
      %18 = sbr.rel (0) target = $region13
    $region12: #{pert_forward.1} parent=1 // pred_region
      _
    $region13: #{pert_forward.1} parent=1 // pred_fallthru
      _
    // Predicated region
    $region14: #{pert_forward.1} parent=1 // pred_check
      _
    $region15: #{pert_forward.1} parent=1 // pred_check_branch
      %20 = sbr.rel (0) target = $region17
    $region16: #{pert_forward.1} parent=1 // pred_region
      _
    $region17: #{pert_forward.1} parent=1 // pred_fallthru
      _
    // Predicated region
    $region18: #{pert_forward.1} parent=1 // pred_check
      _
    $region19: #{pert_forward.1} parent=1 // pred_check_branch
      %22 = sbr.rel (0) target = $region21
    $region20: #{pert_forward.1} parent=1 // pred_region
      %s24 = ssub.s32 1280, 1280
      %25 = vsyncadd [#allocation3], %s24
      %s26 = sshll.u32 [#allocation2], 4
      %s27 = int_to_ptr.vmem [resolvable:$true] %s26
      %32 = dma.hbm_to_vmem [thread:$0]  %s4, 1280, %s27, [#allocation3], 64, 64, 4
    $region21: #{pert_forward.1} parent=1 // pred_fallthru
      _
    // Predicated region
    $region22: #{pert_forward.1} parent=1 // pred_check
      _
    $region23: #{pert_forward.1} parent=1 // pred_check_branch
      %34 = sbr.rel (0) target = $region25
    $region24: #{pert_forward.1} parent=1 // pred_region
      _
    $region25: #{pert_forward.1} parent=1 // pred_fallthru
      _
    // Predicated region
    $region26: #{pert_forward.1} parent=1 // pred_check
      _
    $region27: #{pert_forward.1} parent=1 // pred_check_branch
      %36 = sbr.rel (0) target = $region29
    $region28: #{pert_forward.1} parent=1 // pred_region
      %37 = dma.done [#allocation3], 1280
    $region29: #{pert_forward.1} parent=1 // pred_fallthru
      _
    %v39 = vld [vmem:[%s0] sm:$0x3]
    %v40 = vld [vmem:[%s1] sm:$0x3]
    %v41 = vlaneseq
    %v42 = vand.u32 %v41, 127
    %v43 = vlaneseq
    %v44 = vshrl.u32 %v43, 7
    %v45 = vsub.s32 0, %v44
    %v46 = vrot.slane %v39, %v45
    %48 = vbcast.lane.b32.xlu0 %v46, 256
    %v49 = vpop.permute.xlu0 %48
    %s51 = sor.u32 256, 8
    %52 = vbcast.lane.b32.xlu0 %v46, %s51
    %v53 = vpop.permute.xlu0 %52
    %v54 = vlaneseq
    %v55 = vshrl.u32 %v54, 7
    %v56 = vsub.s32 1, %v55
    %v57 = vrot.slane %v39, %v56
    %59 = vbcast.lane.b32.xlu0 %v57, 256
    %v60 = vpop.permute.xlu0 %59
    %s62 = sor.u32 256, 8
    %63 = vbcast.lane.b32.xlu0 %v57, %s62
    %v64 = vpop.permute.xlu0 %63
    %vm65 = vcmp.eq.s32.totalorder %v42, %v49
    %vm66 = vcmp.eq.s32.totalorder %v42, %v53
    %vm67 = vcmp.eq.s32.totalorder %v42, %v60
    %vm68 = vcmp.eq.s32.totalorder %v42, %v64
    %v69 = vlaneseq
    %v70 = vshrl.u32 %v69, 7
    %v71 = vsub.s32 0, %v70
    %v72 = vrot.slane %v40, %v71
    %74 = vbcast.lane.b32.xlu0 %v72, 256
    %v75 = vpop.permute.xlu0 %74
    %s77 = sor.u32 256, 8
    %78 = vbcast.lane.b32.xlu0 %v72, %s77
    %v79 = vpop.permute.xlu0 %78
    %v80 = vlaneseq
    %v81 = vshrl.u32 %v80, 7
    %v82 = vsub.s32 1, %v81
    %v83 = vrot.slane %v40, %v82
    %85 = vbcast.lane.b32.xlu0 %v83, 256
    %v86 = vpop.permute.xlu0 %85
    %s88 = sor.u32 256, 8
    %89 = vbcast.lane.b32.xlu0 %v83, %s88
    %v90 = vpop.permute.xlu0 %89
    %v91 = vadd.s32 %v75, 50
    %v92 = vadd.s32 %v79, 50
    %v93 = vadd.s32 %v86, 50
    %v94 = vadd.s32 %v90, 50
    %vm95 = vcmp.eq.s32.totalorder %v42, %v91
    %vm96 = vcmp.eq.s32.totalorder %v42, %v92
    %vm97 = vcmp.eq.s32.totalorder %v42, %v93
    %vm98 = vcmp.eq.s32.totalorder %v42, %v94
    %vm99 = vmor %vm65, %vm95
    %vm100 = vmor %vm66, %vm96
    %vm101 = vmor %vm67, %vm97
    %vm102 = vmor %vm68, %vm98
    %v103 = vsel %vm99, 1, 0
    %v104 = vsel %vm100, 1, 0
    %v105 = vsel %vm101, 1, 0
    %v106 = vsel %vm102, 1, 0
    %v107 = vcvt.s32.f32 %v103
    %v108 = vcvt.s32.f32 %v104
    %v109 = vcvt.s32.f32 %v105
    %v110 = vcvt.s32.f32 %v106
    %v111 = vpack.c.bf16 %v108, %v107
    %v112 = vpack.c.bf16 %v110, %v109
    %v113 = vld [vmem:[%s3] sm:$0xf]
    %v114 = vld [vmem:[%s3 + $0x4] sm:$0xf]
    %v115 = vld [vmem:[%s3 + $0x8] sm:$0xf]
    %v116 = vld [vmem:[%s3 + $0xc] sm:$0xf]
    %v117 = vld [vmem:[%s3 + $0x10] sm:$0xf]
    %v118 = vld [vmem:[%s3 + $0x14] sm:$0xf]
    %v119 = vld [vmem:[%s3 + $0x18] sm:$0xf]
    %v120 = vld [vmem:[%s3 + $0x1c] sm:$0xf]
    %v129 = vunpack.c.l.b16 %v113
    %v130 = vunpack.c.l.b16 %v114
    %v131 = vunpack.c.l.b16 %v115
    %v132 = vunpack.c.l.b16 %v116
    %v133 = vunpack.c.l.b16 %v117
    %v134 = vunpack.c.l.b16 %v118
    %v135 = vunpack.c.l.b16 %v119
    %v136 = vunpack.c.l.b16 %v120
    %v137 = vpack.c.b16 %v130, %v129
    %v138 = vpack.c.b16 %v132, %v131
    %v139 = vpack.c.b16 %v134, %v133
    %v140 = vpack.c.b16 %v136, %v135
    %vm145 = vcmask 523264
    %v147 = vsel %vm145, %v111, 0
    %v150 = vsel %vm145, %v112, 0
    %152 = vmatprep.subr.bf16.mxu0 0
    %153 = vmatpush1.bf16.msra.mxu0 0
    %154 = vmatprep.subr.bf16.mxu0 0
    %155 = vmatpush1.bf16.msra.mxu0 0
    %156 = vmatprep.subr.bf16.mxu0 0
    %157 = vmatpush1.bf16.msra.mxu0 0
    %158 = vmatprep.subr.bf16.mxu0 0
    %159 = vmatpush1.bf16.msra.mxu0 0
    %160 = vmatprep.subr.bf16.mxu0 0
    %161 = vmatpush1.bf16.msra.mxu0 %v140
    %162 = vmatprep.subr.bf16.mxu0 0
    %163 = vmatpush1.bf16.msra.mxu0 %v139
    %164 = vmatprep.subr.bf16.mxu0 0
    %165 = vmatpush1.bf16.msra.mxu0 %v138
    %166 = vmatprep.subr.bf16.mxu0 0
    %167 = vmatpush1.bf16.msra.mxu0 %v137
    %168 = vmatprep.subr.bf16.mxu0 0
    %169 = vmatpush2.bf16.msra.mxu0 0
    %170 = vmatprep.subr.bf16.mxu0 0
    %171 = vmatpush2.bf16.msra.mxu0 0
    %172 = vmatprep.subr.bf16.mxu0 0
    %173 = vmatpush2.bf16.msra.mxu0 0
    %174 = vmatprep.subr.bf16.mxu0 0
    %175 = vmatpush2.bf16.msra.mxu0 0
    %176 = vmatprep.subr.bf16.mxu0 0
    %177 = vmatpush2.bf16.msra.mxu0 0
    %178 = vmatprep.subr.bf16.mxu0 0
    %179 = vmatpush2.bf16.msra.mxu0 0
    %180 = vmatprep.subr.bf16.mxu0 0
    %181 = vmatpush2.bf16.msra.mxu0 0
    %182 = vmatprep.subr.bf16.mxu0 0
    %183 = vmatpush2.bf16.msra.mxu0 0
    %184 = vmatprep.mubr.bf16.mxu0 0
    %185 = vmatmul.mubr.bf16.gmra.mxu0 %v147
    %v186 = vpop.f32.mrf.mxu0
    %v187 = vadd.f32 0.0, %v186
    %v188 = vpop.f32.mrf.mxu0
    %v189 = vpop.f32.mrf.mxu0
    %v190 = vadd.f32 0.0, %v189
    %v191 = vpop.f32.mrf.mxu0
    %192 = vmatprep.mubr.bf16.mxu0 0
    %193 = vmatmul.mubr.bf16.gmra.mxu0 %v150
    %v194 = vpop.f32.mrf.mxu0
    %v195 = vadd.f32 0.0, %v194
    %v196 = vpop.f32.mrf.mxu0
    %v197 = vpop.f32.mrf.mxu0
    %v198 = vadd.f32 0.0, %v197
    %v199 = vpop.f32.mrf.mxu0
    %200 = vdwg.mxu0
    %v201 = vld [vmem:[%s3 + $0x20] sm:$0xf]
    %v202 = vld [vmem:[%s3 + $0x24] sm:$0xf]
    %v203 = vunpack.c.l.bf16 %v201
    %v204 = vunpack.c.l.bf16 %v202
    %v205 = vadd.f32 %v187, %v203
    %v206 = vadd.f32 %v190, %v204
    %v207 = vadd.f32 %v195, %v203
    %v208 = vadd.f32 %v198, %v204
    %v209 = vtanh.pop %v205
    %v210 = vtanh.pop %v206
    %v211 = vtanh.pop %v207
    %v212 = vtanh.pop %v208
    %v213 = vld [vmem:[%s2] sm:$0x3]
    %v214 = vlaneseq
    %v215 = vshrl.u32 %v214, 7
    %v216 = vsub.s32 0, %v215
    %v217 = vrot.slane %v213, %v216
    %219 = vbcast.lane.b32.xlu0 %v217, 256
    %v220 = vpop.permute.xlu0 %219
    %s222 = sor.u32 256, 8
    %223 = vbcast.lane.b32.xlu0 %v217, %s222
    %v224 = vpop.permute.xlu0 %223
    %v225 = vlaneseq
    %v226 = vshrl.u32 %v225, 7
    %v227 = vsub.s32 1, %v226
    %v228 = vrot.slane %v213, %v227
    %230 = vbcast.lane.b32.xlu0 %v228, 256
    %v231 = vpop.permute.xlu0 %230
    %s233 = sor.u32 256, 8
    %234 = vbcast.lane.b32.xlu0 %v228, %s233
    %v235 = vpop.permute.xlu0 %234
    %vm236 = vcmp.gt.f32.partialorder %v220, 0.0
    %vm237 = vcmp.gt.f32.partialorder %v224, 0.0
    %vm238 = vcmp.gt.f32.partialorder %v231, 0.0
    %vm239 = vcmp.gt.f32.partialorder %v235, 0.0
    %v240 = vsel %vm236, 1, 0
    %v241 = vsel %vm237, 1, 0
    %v242 = vsel %vm238, 1, 0
    %v243 = vsel %vm239, 1, 0
    %vm244 = vcmp.eq.s32.totalorder %v240, 1
    %vm245 = vcmp.eq.s32.totalorder %v241, 1
    %vm246 = vcmp.eq.s32.totalorder %v242, 1
    %vm247 = vcmp.eq.s32.totalorder %v243, 1
    %v248 = vsel %vm244, %v209, 0.0
    %v249 = vsel %vm245, %v210, 0.0
    %v250 = vsel %vm246, %v211, 0.0
    %v251 = vsel %vm247, %v212, 0.0
    %vm252 = vcmask 123904
    %v253 = vsel %vm252, %v213, 0.0
    %254 = vadd.xlane.f32.xlu0 %v253
    %v255 = vpop.xlane.xlu0 %254
    %v256 = vmax.f32 %v255, 1.0
    %vm257 = vcmask 261120
    %v258 = vsel %vm257, %v248, 0.0
    %v259 = vsel %vm257, %v249, 0.0
    %v260 = vadd.f32 %v258, %v259
    %v261 = vrot.slane %v260, 4
    %v262 = vadd.f32 %v260, %v261
    %v263 = vrot.slane %v262, 2
    %v264 = vadd.f32 %v262, %v263
    %v265 = vrot.slane %v264, 1
    %v266 = vadd.f32 %v264, %v265
    %v267 = vsel %vm257, %v250, 0.0
    %v268 = vsel %vm257, %v251, 0.0
    %v269 = vadd.f32 %v267, %v268
    %v270 = vrot.slane %v269, 4
    %v271 = vadd.f32 %v269, %v270
    %v272 = vrot.slane %v271, 2
    %v273 = vadd.f32 %v271, %v272
    %v274 = vrot.slane %v273, 1
    %v275 = vadd.f32 %v273, %v274
    %v276 = vrcp.pop %v256
    %v278 = vrot.slane %v276, 1
    %v281 = vmul.f32 %v266, %v276
    %v282 = vmul.f32 %v275, %v278
    %v283 = vadd.f32 %v209, %v281
    %v284 = vadd.f32 %v211, %v282
    %v285 = vpack.c.bf16 %v283, %v283
    %v286 = vpack.c.bf16 %v284, %v284
    %v287 = vld [vmem:[%s5] sm:$0x3]
    %v288 = vld [vmem:[#allocation2] sm:$0xf]
    %v289 = vld [vmem:[#allocation2 + $0x4] sm:$0xf]
    %v290 = vld [vmem:[#allocation2 + $0x8] sm:$0xf]
    %v291 = vld [vmem:[#allocation2 + $0xc] sm:$0xf]
    %v292 = vlaneseq
    %v293 = vshrl.u32 %v292, 7
    %v294 = vsub.s32 0, %v293
    %v295 = vrot.slane %v287, %v294
    %v298 = vunpack.c.l.b16 %v285
    %v299 = vunpack.c.l.b16 %v286
    %v300 = vrot.slane %v299, 7
    %vm301 = vcmask 1041409
    %v302 = vsel %vm301, %v300, %v298
    %v303 = vpack.c.b16 %v302, %v302
    %v308 = vunpack.c.l.b16 %v288
    %v309 = vunpack.c.l.b16 %v289
    %v310 = vunpack.c.l.b16 %v290
    %v311 = vunpack.c.l.b16 %v291
    %v312 = vpack.c.b16 %v309, %v308
    %v313 = vpack.c.b16 %v311, %v310
    %v317 = vsel %vm257, %v303, 0
    %319 = vmatprep.subr.bf16.mxu0 0
    %320 = vmatpush1.bf16.msra.mxu0 0
    %321 = vmatprep.subr.bf16.mxu0 0
    %322 = vmatpush1.bf16.msra.mxu0 0
    %323 = vmatprep.subr.bf16.mxu0 0
    %324 = vmatpush1.bf16.msra.mxu0 0
    %325 = vmatprep.subr.bf16.mxu0 0
    %326 = vmatpush1.bf16.msra.mxu0 0
    %327 = vmatprep.subr.bf16.mxu0 0
    %328 = vmatpush1.bf16.msra.mxu0 0
    %329 = vmatprep.subr.bf16.mxu0 0
    %330 = vmatpush1.bf16.msra.mxu0 0
    %331 = vmatprep.subr.bf16.mxu0 0
    %332 = vmatpush1.bf16.msra.mxu0 %v313
    %333 = vmatprep.subr.bf16.mxu0 0
    %334 = vmatpush1.bf16.msra.mxu0 %v312
    %335 = vmatprep.subr.bf16.mxu0 0
    %336 = vmatpush2.bf16.msra.mxu0 0
    %337 = vmatprep.subr.bf16.mxu0 0
    %338 = vmatpush2.bf16.msra.mxu0 0
    %339 = vmatprep.subr.bf16.mxu0 0
    %340 = vmatpush2.bf16.msra.mxu0 0
    %341 = vmatprep.subr.bf16.mxu0 0
    %342 = vmatpush2.bf16.msra.mxu0 0
    %343 = vmatprep.subr.bf16.mxu0 0
    %344 = vmatpush2.bf16.msra.mxu0 0
    %345 = vmatprep.subr.bf16.mxu0 0
    %346 = vmatpush2.bf16.msra.mxu0 0
    %347 = vmatprep.subr.bf16.mxu0 0
    %348 = vmatpush2.bf16.msra.mxu0 0
    %349 = vmatprep.subr.bf16.mxu0 0
    %350 = vmatpush2.bf16.msra.mxu0 0
    %351 = vmatprep.mubr.bf16.mxu0 0
    %352 = vmatmul.mubr.bf16.gmra.mxu0 %v317
    %v353 = vpop.f32.mrf.mxu0
    %v354 = vadd.f32 %v295, %v353
    %v355 = vpop.f32.mrf.mxu0
    %v356 = vpop.f32.mrf.mxu0
    %v357 = vpop.f32.mrf.mxu0
    %358 = vdwg.mxu0
    %v359 = vtanh.pop %v354
    %v360 = vpack.c.bf16 %v359, %v359
    %v361 = vld [vmem:[#allocation2 + $0x10] sm:$0xf]
    %v362 = vld [vmem:[#allocation2 + $0x14] sm:$0xf]
    %v363 = vld [vmem:[#allocation2 + $0x18] sm:$0xf]
    %v364 = vld [vmem:[#allocation2 + $0x1c] sm:$0xf]
    %v365 = vld [vmem:[#allocation2 + $0x20] sm:$0xf]
    %v366 = vld [vmem:[#allocation2 + $0x24] sm:$0xf]
    %v367 = vld [vmem:[#allocation2 + $0x28] sm:$0xf]
    %v368 = vld [vmem:[#allocation2 + $0x2c] sm:$0xf]
    %v369 = vld [vmem:[#allocation2 + $0x30] sm:$0xf]
    %v370 = vld [vmem:[#allocation2 + $0x34] sm:$0xf]
    %v371 = vld [vmem:[#allocation2 + $0x38] sm:$0xf]
    %v372 = vld [vmem:[#allocation2 + $0x3c] sm:$0xf]
    %v373 = vld [vmem:[#allocation2 + $0x40] sm:$0xf]
    %v374 = vld [vmem:[#allocation2 + $0x44] sm:$0xf]
    %v375 = vld [vmem:[#allocation2 + $0x48] sm:$0xf]
    %v376 = vld [vmem:[#allocation2 + $0x4c] sm:$0xf]
    %v377 = vlaneseq
    %v378 = vshrl.u32 %v377, 7
    %v379 = vsub.s32 1, %v378
    %v380 = vrot.slane %v287, %v379
    %v397 = vunpack.c.l.b16 %v361
    %v398 = vunpack.c.l.b16 %v362
    %v399 = vunpack.c.l.b16 %v363
    %v400 = vunpack.c.l.b16 %v364
    %v401 = vunpack.c.l.b16 %v365
    %v402 = vunpack.c.l.b16 %v366
    %v403 = vunpack.c.l.b16 %v367
    %v404 = vunpack.c.l.b16 %v368
    %v405 = vunpack.c.l.b16 %v369
    %v406 = vunpack.c.l.b16 %v370
    %v407 = vunpack.c.l.b16 %v371
    %v408 = vunpack.c.l.b16 %v372
    %v409 = vunpack.c.l.b16 %v373
    %v410 = vunpack.c.l.b16 %v374
    %v411 = vunpack.c.l.b16 %v375
    %v412 = vunpack.c.l.b16 %v376
    %v413 = vpack.c.b16 %v398, %v397
    %v414 = vpack.c.b16 %v400, %v399
    %v415 = vpack.c.b16 %v402, %v401
    %v416 = vpack.c.b16 %v404, %v403
    %v417 = vpack.c.b16 %v406, %v405
    %v418 = vpack.c.b16 %v408, %v407
    %v419 = vpack.c.b16 %v410, %v409
    %v420 = vpack.c.b16 %v412, %v411
    %429 = vmatprep.subr.bf16.mxu0 0
    %430 = vmatpush1.bf16.msra.mxu0 %v420
    %431 = vmatprep.subr.bf16.mxu0 0
    %432 = vmatpush1.bf16.msra.mxu0 %v419
    %433 = vmatprep.subr.bf16.mxu0 0
    %434 = vmatpush1.bf16.msra.mxu0 %v418
    %435 = vmatprep.subr.bf16.mxu0 0
    %436 = vmatpush1.bf16.msra.mxu0 %v417
    %437 = vmatprep.subr.bf16.mxu0 0
    %438 = vmatpush1.bf16.msra.mxu0 %v416
    %439 = vmatprep.subr.bf16.mxu0 0
    %440 = vmatpush1.bf16.msra.mxu0 %v415
    %441 = vmatprep.subr.bf16.mxu0 0
    %442 = vmatpush1.bf16.msra.mxu0 %v414
    %443 = vmatprep.subr.bf16.mxu0 0
    %444 = vmatpush1.bf16.msra.mxu0 %v413
    %445 = vmatprep.subr.bf16.mxu0 0
    %446 = vmatpush2.bf16.msra.mxu0 0
    %447 = vmatprep.subr.bf16.mxu0 0
    %448 = vmatpush2.bf16.msra.mxu0 0
    %449 = vmatprep.subr.bf16.mxu0 0
    %450 = vmatpush2.bf16.msra.mxu0 0
    %451 = vmatprep.subr.bf16.mxu0 0
    %452 = vmatpush2.bf16.msra.mxu0 0
    %453 = vmatprep.subr.bf16.mxu0 0
    %454 = vmatpush2.bf16.msra.mxu0 0
    %455 = vmatprep.subr.bf16.mxu0 0
    %456 = vmatpush2.bf16.msra.mxu0 0
    %457 = vmatprep.subr.bf16.mxu0 0
    %458 = vmatpush2.bf16.msra.mxu0 0
    %459 = vmatprep.subr.bf16.mxu0 0
    %460 = vmatpush2.bf16.msra.mxu0 0
    %461 = vmatprep.mubr.bf16.mxu0 0
    %462 = vmatmul.mubr.bf16.gmra.mxu0 %v360
    %v463 = vpop.f32.mrf.mxu0
    %v464 = vadd.f32 %v380, %v463
    %v465 = vpop.f32.mrf.mxu0
    %v466 = vpop.f32.mrf.mxu0
    %v467 = vpop.f32.mrf.mxu0
    %468 = vdwg.mxu0
    %v469 = vmax.f32 %v464, 0.0
    %470 = vst [vmem:[#allocation5] sm:$0x3] %v469
    // Predicated region
    $region30: #{pert_forward.1} parent=1 // pred_check
      _
    $region31: #{pert_forward.1} parent=1 // pred_check_branch
      %472 = sbr.rel (0) target = $region33
    $region32: #{pert_forward.1} parent=1 // pred_region
      %s474 = ssub.s32 32, 32
      %475 = vsyncadd [#allocation4], %s474
      %s477 = sshll.u32 [#allocation5], 4
      %s478 = int_to_ptr.vmem [resolvable:$true] %s477
      %480 = dma.vmem_to_hbm [thread:$0]  %s478, 32, %s6, [#allocation4]
    $region33: #{pert_forward.1} parent=1 // pred_fallthru
      _
    // Predicated region
    $region34: #{pert_forward.1} parent=1 // pred_check
      _
    $region35: #{pert_forward.1} parent=1 // pred_check_branch
      %482 = sbr.rel (0) target = $region37
    $region36: #{pert_forward.1} parent=1 // pred_region
      %483 = dma.done [#allocation4], 32
    $region37: #{pert_forward.1} parent=1 // pred_fallthru
      _
    %484 = vsyncpa [#allocation3], 1
    %485 = vsyncpa [#allocation4], 1

</llo_original>
